<compile_context>
chip_gen: v5e
topology: v5e:2x2
jax: 0.10.0
libtpu: 0.0.40
codegen_flags: <defaults>
</compile_context>

<pallas_src>
import functools

import jax
import jax.numpy as jnp
from jax import lax
from jax.experimental import pallas as pl
from jax.experimental.pallas import tpu as pltpu

C_IN = 32
C_OUT = 32
KSIZE = 4
STRIDE = 2
PAD = 1
NEG_SLOPE = 0.2

KD = 9 * C_IN        # 288 : 3x3 neighbourhood x C_IN   (contraction dim)
NO = 4 * C_OUT       # 128 : four output parities stacked along lanes


def _deconv_matmul_kernel(a_ref, b_ref, o_ref):
    # a_ref: (tm, KD) bf16 patch tile; b_ref: (KD, NO) bf16 parity-packed weights
    acc = jnp.dot(a_ref[...], b_ref[...], preferred_element_type=jnp.float32)
    # fused LeakyReLU(0.2) on the f32 accumulator
    o_ref[...] = jnp.where(acc >= 0, acc, NEG_SLOPE * acc).astype(o_ref.dtype)


def pack_deconv_weights(w):
    """(C_IN, C_OUT, 4, 4) ConvTranspose2d weights -> (288, 128) parity-packed matrix.

    Row index = (dy*3 + dx)*C_IN + ci   (dy, dx: offset in the 3x3 padded neighbourhood)
    Col index = (py*2 + px)*C_OUT + co  (py, px: output sub-pixel parity)
    Entry     = W[ci, co, 3 - 2*dy + py, 3 - 2*dx + px] when that tap exists, else 0.
    """
    b6 = jnp.zeros((3, 3, C_IN, 2, 2, C_OUT), w.dtype)
    for py in range(2):
        for dy in (py, py + 1):
            ky = 3 - 2 * dy + py
            for px in range(2):
                for dx in (px, px + 1):
                    kx = 3 - 2 * dx + px
                    b6 = b6.at[dy, dx, :, py, px, :].set(w[:, :, ky, kx])
    return b6.reshape(KD, NO)


def _choose_tm(m, tm_max):
    tm = min(tm_max, m)
    # prefer >= 2 grid steps when there is enough work (keeps both v7x TCs busy)
    if tm == m and m >= 256:
        tm = (m + 1) // 2
    tm = max(16, (tm // 16) * 16)   # sublane-aligned for bf16 tiles
    return tm


@functools.partial(jax.jit, static_argnames=("tm_max",))
def upsample_block_pallas(x, w, *, tm_max=2048):
    """x: (N, C_IN, H, W) f32, w: (C_IN, C_OUT, 4, 4) PyTorch ConvTranspose2d layout.

    Returns LeakyReLU_0.2(ConvTranspose2d(x, w, stride=2, padding=1)) as
    (N, C_OUT, 2H, 2W) float32.
    """
    n, c, h, wdt = x.shape
    assert c == C_IN
    m = n * h * wdt

    # --- glue: 3x3-neighbourhood im2col on the *raw* input, built directly in
    #     (N, H, W, dy, dx, C) order (no post-transpose of the big tensor). ---
    # TODO(synk): the 9x im2col is still XLA glue; moving the 3x3 gather in-kernel
    # (NHWC x ref in pl.ANY + manual DMA) would cut the remaining glue HBM traffic.
    x_nhwc = jnp.transpose(x, (0, 2, 3, 1))
    xp = jnp.pad(x_nhwc, ((0, 0), (1, 1), (1, 1), (0, 0)))
    patches = jnp.concatenate(
        [xp[:, dy:dy + h, dx:dx + wdt, :] for dy in range(3) for dx in range(3)],
        axis=-1)
    a = patches.reshape(m, KD).astype(jnp.bfloat16)

    # parity-packed weight matrix (small: 288x128 = 72 KiB bf16, stays VMEM-resident)
    b = pack_deconv_weights(w).astype(jnp.bfloat16)

    # --- tiling: large M tile, pad M so the grid divides evenly (tail rows are zeros) ---
    tm = _choose_tm(m, tm_max)
    m_pad = pl.cdiv(m, tm) * tm
    if m_pad != m:
        a = jnp.pad(a, ((0, m_pad - m), (0, 0)))

    cost = pl.CostEstimate(
        flops=2 * m_pad * KD * NO,
        transcendentals=0,
        bytes_accessed=a.size * 2 + b.size * 2 + m_pad * NO * 4,
    )

    out_flat = pl.pallas_call(
        _deconv_matmul_kernel,
        out_shape=jax.ShapeDtypeStruct((m_pad, NO), jnp.float32),
        grid_spec=pltpu.PrefetchScalarGridSpec(
            num_scalar_prefetch=0,
            grid=(m_pad // tm,),
            in_specs=[
                pl.BlockSpec((tm, KD), lambda i: (i, 0)),
                pl.BlockSpec((KD, NO), lambda i: (0, 0)),   # constant -> resident weights
            ],
            out_specs=pl.BlockSpec((tm, NO), lambda i: (i, 0)),
        ),
        compiler_params=pltpu.CompilerParams(
            dimension_semantics=("parallel",),
            vmem_limit_bytes=32 * 1024 * 1024,   # explicit cap, safe on v5e/v6e/v7x
        ),
        cost_estimate=cost,
    )(a, b)

    # --- pixel-shuffle the 4 parity lanes back to NCHW ---
    out6 = out_flat[:m].reshape(n, h, wdt, 2, 2, C_OUT)
    y = out6.transpose(0, 5, 1, 3, 2, 4).reshape(n, C_OUT, 2 * h, 2 * wdt)
    return y


def _reference(x, w):
    # pure-JAX f32 reference: conv-transpose expressed as a dilated conv
    w_conv = jnp.flip(w, axis=(2, 3)).transpose(1, 0, 2, 3)  # (Cout, Cin, K, K)
    y = lax.conv_general_dilated(
        x, w_conv,
        window_strides=(1, 1),
        padding=((KSIZE - 1 - PAD,) * 2, (KSIZE - 1 - PAD,) * 2),
        lhs_dilation=(STRIDE, STRIDE),
        dimension_numbers=("NCHW", "OIHW", "NCHW"),
    )
    return jnp.where(y >= 0, y, NEG_SLOPE * y)


if __name__ == "__main__":
    key = jax.random.PRNGKey(0)
    kx, kw = jax.random.split(key)

    # small shapes consistent with the module: _Upsample_Block requires 32 channels
    N, H, W = 2, 16, 16
    x = jax.random.normal(kx, (N, C_IN, H, W), dtype=jnp.float32)
    # deterministic synthetic weights, PyTorch ConvTranspose2d layout (Cin, Cout, K, K)
    w = jax.random.normal(kw, (C_IN, C_OUT, KSIZE, KSIZE), dtype=jnp.float32) * 0.05

    out = upsample_block_pallas(x, w)
    out = jax.block_until_ready(out)

    ref = _reference(x, w)
    assert out.shape == (N, C_OUT, H * 2, W * 2)
    # bf16 operands / f32 accumulate => slightly looser tolerance than pure-f32
    assert jnp.allclose(out, ref, atol=2e-2, rtol=2e-2), "mismatch vs reference"

    print("KERNEL_OK")
</pallas_src>

<mosaic_0001>
module attributes {stable_mosaic.version = 11 : i64} {
  func.func @_deconv_matmul_kernel(%arg0: i32, %arg1: memref<256x288xbf16, #tpu.memory_space<vmem>>, %arg2: memref<288x128xbf16, #tpu.memory_space<vmem>>, %arg3: memref<256x128xf32, #tpu.memory_space<vmem>>) attributes {dimension_semantics = [#tpu.dimension_semantics<parallel>], iteration_bounds = array<i64: 2>, scalar_prefetch = 0 : i64, scratch_operands = 0 : i64, tpu.core_type = #tpu.core_type<tc>, window_params = [{transform_indices = @transform_0, window_bounds = array<i64: 256, 288>}, {pipeline_mode = #tpu.pipeline_mode<synchronous>, transform_indices = @transform_1, window_bounds = array<i64: 288, 128>}, {transform_indices = @transform_2, window_bounds = array<i64: 256, 128>}]} {
    %c0 = arith.constant 0 : index
    %c0_0 = arith.constant 0 : index
    %0 = vector.load %arg1[%c0, %c0_0] : memref<256x288xbf16, #tpu.memory_space<vmem>>, vector<256x288xbf16>
    %c0_1 = arith.constant 0 : index
    %c0_2 = arith.constant 0 : index
    %1 = vector.load %arg2[%c0_1, %c0_2] : memref<288x128xbf16, #tpu.memory_space<vmem>>, vector<288x128xbf16>
    %cst = arith.constant dense<0.000000e+00> : vector<256x128xf32>
    %2 = tpu.matmul %0, %1, %cst {dimension_numbers = #tpu.dot_dimension_numbers<[1], [0], [0], [1], [0, 0, 1, 1], [], []>} : vector<256x288xbf16>, vector<288x128xbf16>, vector<256x128xf32> -> vector<256x128xf32>
    %cst_3 = arith.constant 0.000000e+00 : f32
    %3 = vector.broadcast %cst_3 : f32 to vector<256x128xf32>
    %4 = arith.cmpf oge, %2, %3 : vector<256x128xf32>
    %cst_4 = arith.constant 2.000000e-01 : f32
    %5 = vector.broadcast %cst_4 : f32 to vector<256x128xf32>
    %6 = arith.mulf %5, %2 : vector<256x128xf32>
    %7 = arith.select %4, %2, %6 : vector<256x128xi1>, vector<256x128xf32>
    %c0_5 = arith.constant 0 : index
    %c0_6 = arith.constant 0 : index
    %8 = vector.load %arg3[%c0_5, %c0_6] : memref<256x128xf32, #tpu.memory_space<vmem>>, vector<256x128xf32>
    tpu.vector_store %arg3[%c0_5, %c0_6], %7 {strides = array<i32>} : memref<256x128xf32, #tpu.memory_space<vmem>>, vector<256x128xf32>,
    return
  }
  func.func @transform_0(%arg0: i32) -> (i32, i32) {
    %c0_i32 = arith.constant 0 : i32
    %c0_i32_0 = arith.constant 0 : i32
    return %arg0, %c0_i32 : i32, i32
  }
  func.func @transform_1(%arg0: i32) -> (i32, i32) {
    %c0_i32 = arith.constant 0 : i32
    %c0_i32_0 = arith.constant 0 : i32
    %c0_i32_1 = arith.constant 0 : i32
    return %c0_i32, %c0_i32_0 : i32, i32
  }
  func.func @transform_2(%arg0: i32) -> (i32, i32) {
    %c0_i32 = arith.constant 0 : i32
    %c0_i32_0 = arith.constant 0 : i32
    return %arg0, %c0_i32 : i32, i32
  }
}

</mosaic_0001>

<llo_original>
// kernel: upsample_block_pallas.1
$region0: #{upsample_block_pallas.1}
  #allocation0 [shape = 'u32[]', space=smem, size = 0x4, offset = 0x4, fixed_abs, tag = 'smem constant byte address 0x4 - core index']
  #allocation1 [shape = 'u32[72,128]{1,0:T(1,128)}', space=vmem, size = 0x9000, scoped, tag = 'internal scratch']
  %s0 = inlined_call_operand.vmem [shape: bf16[512,288], index: 0, kind: input, shape index: {}]
  %s1 = inlined_call_operand.vmem [shape: bf16[288,128], index: 1, kind: input, shape index: {}]
  %s2 = inlined_call_operand.vmem [shape: f32[512,128], index: 2, kind: output, shape index: {}]
  %s3 = sld [smem:[#allocation0]]
  $region41: #{upsample_block_pallas.1} parent=0
    _
  %s5 = ssub.s32 1, %s3
  %s6 = scalar_select 0, %s5, %s3
  loop: start=0, step=1, limit=4
  $region2: #{upsample_block_pallas.1} parent=0 // loop_pre_header
    _
  $region3: #{upsample_block_pallas.1} parent=0 // loop_header
    %s8 = sphi 0, %s12
    %p9 = scmp.ge.s32.totalorder %s8, 4
    %s18 = sphi 0, %s20
    %s21 = sphi 0, %s18
    %s22 = sphi 0, %s21
    %s38 = sphi 0, %s22
    %s42 = sphi 0, %s42
    %s44 = sphi 0, %s42
    %s45 = sphi 0, %s44
    %s59 = sphi 0, %s45
    %s65 = sphi 0, %s67
    %s68 = sphi 0, %s65
    %s69 = sphi 0, %s68
    %s85 = sphi 0, %s69
  $region4: #{upsample_block_pallas.1} parent=0 // loop_header_branch
    %11 = sbr.rel (%p9) target = $region8
  $region5: #{upsample_block_pallas.1} parent=0 // loop_body
    %s13 = ssub.s32 %s8, 1
    %s14 = ssub.s32 %s8, 2
    %s15 = sadd.s32 %s8, 1
    %s16 = ssub.s32 %s8, %s15
    %p17 = scmp.eq.s32.totalorder %s16, 0
    %s19 = sadd.s32 %s18, 1
    %s20 = scalar_select %p17, %s18, %s19
    %p23 = pneg %p17
    %p24 = scmp.eq.s32.totalorder %s8, 1
    %p25 = por %p23, %p24
    %p26 = scmp.ne.s32.totalorder %s18, %s21
    %p27 = scmp.eq.s32.totalorder %s8, 0
    %p28 = por %p26, %p27
    %p29 = scmp.ne.s32.totalorder %s18, %s21
    %p30 = scmp.eq.s32.totalorder %s13, 1
    %p31 = por %p29, %p30
    %p32 = scmp.ne.s32.totalorder %s21, %s22
    %p33 = scmp.eq.s32.totalorder %s13, 0
    %p34 = por %p32, %p33
    %p35 = scmp.ne.s32.totalorder %s21, %s22
    %p36 = scmp.eq.s32.totalorder %s14, 1
    %p37 = por %p35, %p36
    %p39 = scmp.ne.s32.totalorder %s22, %s38
    %p40 = scmp.eq.s32.totalorder %s14, 0
    %p41 = por %p39, %p40
    %s43 = sadd.s32 %s42, 1
    %p46 = scmp.eq.s32.totalorder %s8, 1
    %p47 = scmp.ne.s32.totalorder %s42, %s44
    %p48 = scmp.eq.s32.totalorder %s8, 0
    %p49 = por %p47, %p48
    %p50 = scmp.ne.s32.totalorder %s42, %s44
    %p51 = scmp.eq.s32.totalorder %s13, 1
    %p52 = por %p50, %p51
    %p53 = scmp.ne.s32.totalorder %s44, %s45
    %p54 = scmp.eq.s32.totalorder %s13, 0
    %p55 = por %p53, %p54
    %p56 = scmp.ne.s32.totalorder %s44, %s45
    %p57 = scmp.eq.s32.totalorder %s14, 1
    %p58 = por %p56, %p57
    %p60 = scmp.ne.s32.totalorder %s45, %s59
    %p61 = scmp.eq.s32.totalorder %s14, 0
    %p62 = por %p60, %p61
    %s63 = ssub.s32 %s8, %s15
    %p64 = scmp.eq.s32.totalorder %s63, 0
    %s66 = sadd.s32 %s65, 1
    %s67 = scalar_select %p64, %s65, %s66
    %p70 = pneg %p64
    %p71 = scmp.eq.s32.totalorder %s8, 1
    %p72 = por %p70, %p71
    %p73 = scmp.ne.s32.totalorder %s65, %s68
    %p74 = scmp.eq.s32.totalorder %s8, 0
    %p75 = por %p73, %p74
    %p76 = scmp.ne.s32.totalorder %s65, %s68
    %p77 = scmp.eq.s32.totalorder %s13, 1
    %p78 = por %p76, %p77
    %p79 = scmp.ne.s32.totalorder %s68, %s69
    %p80 = scmp.eq.s32.totalorder %s13, 0
    %p81 = por %p79, %p80
    %p82 = scmp.ne.s32.totalorder %s68, %s69
    %p83 = scmp.eq.s32.totalorder %s14, 1
    %p84 = por %p82, %p83
    %p86 = scmp.ne.s32.totalorder %s69, %s85
    %p87 = scmp.eq.s32.totalorder %s14, 0
    %p88 = por %p86, %p87
    %p89 = scmp.le.s32.totalorder 1, %s8
    %p90 = scmp.lt.s32.totalorder %s8, 3
    %p91 = pnand %p89, %p90
    %p92 = pneg %p91
    // Predicated region
    $region9: #{upsample_block_pallas.1} parent=5 // pred_check
      _
    $region10: #{upsample_block_pallas.1} parent=5 // pred_check_branch
      %94 = sbr.rel (%p91) target = $region12
    $region11: #{upsample_block_pallas.1} parent=5 // pred_region
      %s95 = ssub.s32 %s8, 1
      // Predicated region
      $region13: #{upsample_block_pallas.1} parent=11 // pred_check
        %p96 = pneg %p55
      $region14: #{upsample_block_pallas.1} parent=11 // pred_check_branch
        %98 = sbr.rel (%p96) target = $region16
      $region15: #{upsample_block_pallas.1} parent=11 // pred_region
        _
      $region16: #{upsample_block_pallas.1} parent=11 // pred_fallthru
        _
    $region12: #{upsample_block_pallas.1} parent=5 // pred_fallthru
      _
    %p99 = scmp.lt.s32.totalorder %s8, 2
    // Predicated region
    $region17: #{upsample_block_pallas.1} parent=5 // pred_check
      %p100 = pneg %p99
    $region18: #{upsample_block_pallas.1} parent=5 // pred_check_branch
      %102 = sbr.rel (%p100) target = $region20
    $region19: #{upsample_block_pallas.1} parent=5 // pred_region
      // Predicated region
      $region21: #{upsample_block_pallas.1} parent=19 // pred_check
        %p103 = pneg %p28
      $region22: #{upsample_block_pallas.1} parent=19 // pred_check_branch
        %105 = sbr.rel (%p103) target = $region24
      $region23: #{upsample_block_pallas.1} parent=19 // pred_region
        %s106 = smul.u32 32, %s8
        %p107 = scmp.lt.s32.totalorder %s106, 63
        %s108 = scalar_select %p107, %s106, 63
        %s109 = smul.addr %s108, 3
        %s110 = smul.addr %s109, 4
        %s111 = scalar_lea.vmem %s0, %s110
        %s112 = smul.u32 32, %s8
      $region24: #{upsample_block_pallas.1} parent=19 // pred_fallthru
        _
    $region20: #{upsample_block_pallas.1} parent=5 // pred_fallthru
      _
    %p113 = scmp.le.s32.totalorder 1, %s8
    %p114 = scmp.lt.s32.totalorder %s8, 3
    %p115 = pnand %p113, %p114
    %p116 = pneg %p115
    // Predicated region
    $region25: #{upsample_block_pallas.1} parent=5 // pred_check
      _
    $region26: #{upsample_block_pallas.1} parent=5 // pred_check_branch
      %118 = sbr.rel (%p115) target = $region28
    $region27: #{upsample_block_pallas.1} parent=5 // pred_region
      %s119 = ssub.s32 %s8, 1
      %s120 = smul.u32 32, %s13
      %p121 = scmp.lt.s32.totalorder %s120, 63
      %s122 = scalar_select %p121, %s120, 63
      %s123 = smul.addr %s122, 3
      %s124 = smul.addr %s123, 4
      %s125 = scalar_lea.vmem %s0, %s124
      %p126 = pneg %p34
      %p127 = pneg %p31
      %p128 = pneg %p55
      %p129 = pneg %p52
      %p130 = pneg %p81
      %p131 = pneg %p78
      %s132 = smul.u32 32, %s13
      %p133 = scmp.lt.s32.totalorder %s132, 63
      %s134 = scalar_select %p133, %s132, 63
      %s135 = smul.addr %s134, 8
      %s136 = scalar_lea.vmem %s2, %s135
      %s137 = smul.u32 32, %s13
      %p138 = scmp.lt.s32.totalorder %s137, 63
      %s139 = scalar_select %p138, %s137, 63
      %s140 = smul.addr %s139, 3
      %s141 = smul.addr %s140, 4
      %s142 = scalar_lea.vmem %s0, %s141
      %s143 = smul.u32 32, %s13
      %s144 = smul.u32 32, %s13
      %p145 = scmp.lt.s32.totalorder %s144, 63
      %s146 = scalar_select %p145, %s144, 63
      %s147 = smul.addr %s146, 8
      %s148 = scalar_lea.vmem %s2, %s147
      %s149 = smul.u32 32, %s13
      %v151 = vld [vmem:[%s142] sm:$0xff]
      %v152 = vld [vmem:[%s142 + $0x8] sm:$0xf]
      %v153 = vld [vmem:[%s142 + $0xc] sm:$0xff]
      %v154 = vld [vmem:[%s142 + $0x14] sm:$0xf]
      %v155 = vld [vmem:[%s142 + $0x18] sm:$0xff]
      %v156 = vld [vmem:[%s142 + $0x20] sm:$0xf]
      %v157 = vld [vmem:[%s142 + $0x24] sm:$0xff]
      %v158 = vld [vmem:[%s142 + $0x2c] sm:$0xf]
      %v159 = vld [vmem:[%s142 + $0x30] sm:$0xff]
      %v160 = vld [vmem:[%s142 + $0x38] sm:$0xf]
      %v161 = vld [vmem:[%s142 + $0x3c] sm:$0xff]
      %v162 = vld [vmem:[%s142 + $0x44] sm:$0xf]
      %v163 = vld [vmem:[%s142 + $0x48] sm:$0xff]
      %v164 = vld [vmem:[%s142 + $0x50] sm:$0xf]
      %v165 = vld [vmem:[%s142 + $0x54] sm:$0xff]
      %v166 = vld [vmem:[%s142 + $0x5c] sm:$0xf]
      %v167 = vld [vmem:[%s142 + $0x60] sm:$0xff]
      %v168 = vld [vmem:[%s142 + $0x68] sm:$0xf]
      %v169 = vld [vmem:[%s142 + $0x6c] sm:$0xff]
      %v170 = vld [vmem:[%s142 + $0x74] sm:$0xf]
      %v171 = vld [vmem:[%s142 + $0x78] sm:$0xff]
      %v172 = vld [vmem:[%s142 + $0x80] sm:$0xf]
      %v173 = vld [vmem:[%s142 + $0x84] sm:$0xff]
      %v174 = vld [vmem:[%s142 + $0x8c] sm:$0xf]
      %v175 = vld [vmem:[%s142 + $0x90] sm:$0xff]
      %v176 = vld [vmem:[%s142 + $0x98] sm:$0xf]
      %v177 = vld [vmem:[%s142 + $0x9c] sm:$0xff]
      %v178 = vld [vmem:[%s142 + $0xa4] sm:$0xf]
      %v179 = vld [vmem:[%s142 + $0xa8] sm:$0xff]
      %v180 = vld [vmem:[%s142 + $0xb0] sm:$0xf]
      %v181 = vld [vmem:[%s142 + $0xb4] sm:$0xff]
      %v182 = vld [vmem:[%s142 + $0xbc] sm:$0xf]
      %v183 = vld [vmem:[%s142 + $0xc0] sm:$0xff]
      %v184 = vld [vmem:[%s142 + $0xc8] sm:$0xf]
      %v185 = vld [vmem:[%s142 + $0xcc] sm:$0xff]
      %v186 = vld [vmem:[%s142 + $0xd4] sm:$0xf]
      %v187 = vld [vmem:[%s142 + $0xd8] sm:$0xff]
      %v188 = vld [vmem:[%s142 + $0xe0] sm:$0xf]
      %v189 = vld [vmem:[%s142 + $0xe4] sm:$0xff]
      %v190 = vld [vmem:[%s142 + $0xec] sm:$0xf]
      %v191 = vld [vmem:[%s142 + $0xf0] sm:$0xff]
      %v192 = vld [vmem:[%s142 + $0xf8] sm:$0xf]
      %v193 = vld [vmem:[%s142 + $0xfc] sm:$0xff]
      %v194 = vld [vmem:[%s142 + $0x104] sm:$0xf]
      %v195 = vld [vmem:[%s142 + $0x108] sm:$0xff]
      %v196 = vld [vmem:[%s142 + $0x110] sm:$0xf]
      %v197 = vld [vmem:[%s142 + $0x114] sm:$0xff]
      %v198 = vld [vmem:[%s142 + $0x11c] sm:$0xf]
      %v199 = vld [vmem:[%s142 + $0x120] sm:$0xff]
      %v200 = vld [vmem:[%s142 + $0x128] sm:$0xf]
      %v201 = vld [vmem:[%s142 + $0x12c] sm:$0xff]
      %v202 = vld [vmem:[%s142 + $0x134] sm:$0xf]
      %v203 = vld [vmem:[%s142 + $0x138] sm:$0xff]
      %v204 = vld [vmem:[%s142 + $0x140] sm:$0xf]
      %v205 = vld [vmem:[%s142 + $0x144] sm:$0xff]
      %v206 = vld [vmem:[%s142 + $0x14c] sm:$0xf]
      %v207 = vld [vmem:[%s142 + $0x150] sm:$0xff]
      %v208 = vld [vmem:[%s142 + $0x158] sm:$0xf]
      %v209 = vld [vmem:[%s142 + $0x15c] sm:$0xff]
      %v210 = vld [vmem:[%s142 + $0x164] sm:$0xf]
      %v211 = vld [vmem:[%s142 + $0x168] sm:$0xff]
      %v212 = vld [vmem:[%s142 + $0x170] sm:$0xf]
      %v213 = vld [vmem:[%s142 + $0x174] sm:$0xff]
      %v214 = vld [vmem:[%s142 + $0x17c] sm:$0xf]
      %v215 = vld [vmem:[%s1] sm:$0xf]
      %v216 = vld [vmem:[%s1 + $0x4] sm:$0xf]
      %v217 = vld [vmem:[%s1 + $0x8] sm:$0xf]
      %v218 = vld [vmem:[%s1 + $0xc] sm:$0xf]
      %v219 = vld [vmem:[%s1 + $0x10] sm:$0xf]
      %v220 = vld [vmem:[%s1 + $0x14] sm:$0xf]
      %v221 = vld [vmem:[%s1 + $0x18] sm:$0xf]
      %v222 = vld [vmem:[%s1 + $0x1c] sm:$0xf]
      %v223 = vld [vmem:[%s1 + $0x20] sm:$0xf]
      %v224 = vld [vmem:[%s1 + $0x24] sm:$0xf]
      %v225 = vld [vmem:[%s1 + $0x28] sm:$0xf]
      %v226 = vld [vmem:[%s1 + $0x2c] sm:$0xf]
      %v227 = vld [vmem:[%s1 + $0x30] sm:$0xf]
      %v228 = vld [vmem:[%s1 + $0x34] sm:$0xf]
      %v229 = vld [vmem:[%s1 + $0x38] sm:$0xf]
      %v230 = vld [vmem:[%s1 + $0x3c] sm:$0xf]
      %v231 = vld [vmem:[%s1 + $0x40] sm:$0xf]
      %v232 = vld [vmem:[%s1 + $0x44] sm:$0xf]
      %v233 = vld [vmem:[%s1 + $0x48] sm:$0xf]
      %v234 = vld [vmem:[%s1 + $0x4c] sm:$0xf]
      %v235 = vld [vmem:[%s1 + $0x50] sm:$0xf]
      %v236 = vld [vmem:[%s1 + $0x54] sm:$0xf]
      %v237 = vld [vmem:[%s1 + $0x58] sm:$0xf]
      %v238 = vld [vmem:[%s1 + $0x5c] sm:$0xf]
      %v239 = vld [vmem:[%s1 + $0x60] sm:$0xf]
      %v240 = vld [vmem:[%s1 + $0x64] sm:$0xf]
      %v241 = vld [vmem:[%s1 + $0x68] sm:$0xf]
      %v242 = vld [vmem:[%s1 + $0x6c] sm:$0xf]
      %v243 = vld [vmem:[%s1 + $0x70] sm:$0xf]
      %v244 = vld [vmem:[%s1 + $0x74] sm:$0xf]
      %v245 = vld [vmem:[%s1 + $0x78] sm:$0xf]
      %v246 = vld [vmem:[%s1 + $0x7c] sm:$0xf]
      %v247 = vld [vmem:[%s1 + $0x80] sm:$0xf]
      %v248 = vld [vmem:[%s1 + $0x84] sm:$0xf]
      %v249 = vld [vmem:[%s1 + $0x88] sm:$0xf]
      %v250 = vld [vmem:[%s1 + $0x8c] sm:$0xf]
      %v315 = vunpack.c.l.b16 %v151
      %v316 = vunpack.c.h.b16 %v151
      %v317 = vunpack.c.l.b16 %v152
      %v318 = vunpack.c.l.b16 %v153
      %v319 = vunpack.c.h.b16 %v153
      %v320 = vunpack.c.l.b16 %v154
      %v321 = vunpack.c.l.b16 %v155
      %v322 = vunpack.c.h.b16 %v155
      %v323 = vunpack.c.l.b16 %v156
      %v324 = vunpack.c.l.b16 %v157
      %v325 = vunpack.c.h.b16 %v157
      %v326 = vunpack.c.l.b16 %v158
      %v327 = vunpack.c.l.b16 %v159
      %v328 = vunpack.c.h.b16 %v159
      %v329 = vunpack.c.l.b16 %v160
      %v330 = vunpack.c.l.b16 %v161
      %v331 = vunpack.c.h.b16 %v161
      %v332 = vunpack.c.l.b16 %v162
      %v333 = vunpack.c.l.b16 %v163
      %v334 = vunpack.c.h.b16 %v163
      %v335 = vunpack.c.l.b16 %v164
      %v336 = vunpack.c.l.b16 %v165
      %v337 = vunpack.c.h.b16 %v165
      %v338 = vunpack.c.l.b16 %v166
      %v339 = vunpack.c.l.b16 %v167
      %v340 = vunpack.c.h.b16 %v167
      %v341 = vunpack.c.l.b16 %v168
      %v342 = vunpack.c.l.b16 %v169
      %v343 = vunpack.c.h.b16 %v169
      %v344 = vunpack.c.l.b16 %v170
      %v345 = vunpack.c.l.b16 %v171
      %v346 = vunpack.c.h.b16 %v171
      %v347 = vunpack.c.l.b16 %v172
      %v348 = vunpack.c.l.b16 %v173
      %v349 = vunpack.c.h.b16 %v173
      %v350 = vunpack.c.l.b16 %v174
      %v351 = vunpack.c.l.b16 %v175
      %v352 = vunpack.c.h.b16 %v175
      %v353 = vunpack.c.l.b16 %v176
      %v354 = vunpack.c.l.b16 %v177
      %v355 = vunpack.c.h.b16 %v177
      %v356 = vunpack.c.l.b16 %v178
      %v357 = vunpack.c.l.b16 %v179
      %v358 = vunpack.c.h.b16 %v179
      %v359 = vunpack.c.l.b16 %v180
      %v360 = vunpack.c.l.b16 %v181
      %v361 = vunpack.c.h.b16 %v181
      %v362 = vunpack.c.l.b16 %v182
      %v363 = vunpack.c.l.b16 %v183
      %v364 = vunpack.c.h.b16 %v183
      %v365 = vunpack.c.l.b16 %v184
      %v366 = vunpack.c.l.b16 %v185
      %v367 = vunpack.c.h.b16 %v185
      %v368 = vunpack.c.l.b16 %v186
      %v369 = vunpack.c.l.b16 %v187
      %v370 = vunpack.c.h.b16 %v187
      %v371 = vunpack.c.l.b16 %v188
      %v372 = vunpack.c.l.b16 %v189
      %v373 = vunpack.c.h.b16 %v189
      %v374 = vunpack.c.l.b16 %v190
      %v375 = vunpack.c.l.b16 %v191
      %v376 = vunpack.c.h.b16 %v191
      %v377 = vunpack.c.l.b16 %v192
      %v378 = vunpack.c.l.b16 %v193
      %v379 = vunpack.c.h.b16 %v193
      %v380 = vunpack.c.l.b16 %v194
      %v381 = vunpack.c.l.b16 %v195
      %v382 = vunpack.c.h.b16 %v195
      %v383 = vunpack.c.l.b16 %v196
      %v384 = vunpack.c.l.b16 %v197
      %v385 = vunpack.c.h.b16 %v197
      %v386 = vunpack.c.l.b16 %v198
      %v387 = vunpack.c.l.b16 %v199
      %v388 = vunpack.c.h.b16 %v199
      %v389 = vunpack.c.l.b16 %v200
      %v390 = vunpack.c.l.b16 %v201
      %v391 = vunpack.c.h.b16 %v201
      %v392 = vunpack.c.l.b16 %v202
      %v393 = vunpack.c.l.b16 %v203
      %v394 = vunpack.c.h.b16 %v203
      %v395 = vunpack.c.l.b16 %v204
      %v396 = vunpack.c.l.b16 %v205
      %v397 = vunpack.c.h.b16 %v205
      %v398 = vunpack.c.l.b16 %v206
      %v399 = vunpack.c.l.b16 %v207
      %v400 = vunpack.c.h.b16 %v207
      %v401 = vunpack.c.l.b16 %v208
      %v402 = vunpack.c.l.b16 %v209
      %v403 = vunpack.c.h.b16 %v209
      %v404 = vunpack.c.l.b16 %v210
      %v405 = vunpack.c.l.b16 %v211
      %v406 = vunpack.c.h.b16 %v211
      %v407 = vunpack.c.l.b16 %v212
      %v408 = vunpack.c.l.b16 %v213
      %v409 = vunpack.c.h.b16 %v213
      %v410 = vunpack.c.l.b16 %v214
      %v411 = vpack.c.b16 %v318, %v315
      %v412 = vpack.c.b16 %v319, %v316
      %v413 = vpack.c.b16 %v320, %v317
      %v414 = vpack.c.b16 %v324, %v321
      %v415 = vpack.c.b16 %v325, %v322
      %v416 = vpack.c.b16 %v326, %v323
      %v417 = vpack.c.b16 %v330, %v327
      %v418 = vpack.c.b16 %v331, %v328
      %v419 = vpack.c.b16 %v332, %v329
      %v420 = vpack.c.b16 %v336, %v333
      %v421 = vpack.c.b16 %v337, %v334
      %v422 = vpack.c.b16 %v338, %v335
      %v423 = vpack.c.b16 %v342, %v339
      %v424 = vpack.c.b16 %v343, %v340
      %v425 = vpack.c.b16 %v344, %v341
      %v426 = vpack.c.b16 %v348, %v345
      %v427 = vpack.c.b16 %v349, %v346
      %v428 = vpack.c.b16 %v350, %v347
      %v429 = vpack.c.b16 %v354, %v351
      %v430 = vpack.c.b16 %v355, %v352
      %v431 = vpack.c.b16 %v356, %v353
      %v432 = vpack.c.b16 %v360, %v357
      %v433 = vpack.c.b16 %v361, %v358
      %v434 = vpack.c.b16 %v362, %v359
      %v435 = vpack.c.b16 %v366, %v363
      %v436 = vpack.c.b16 %v367, %v364
      %v437 = vpack.c.b16 %v368, %v365
      %v438 = vpack.c.b16 %v372, %v369
      %v439 = vpack.c.b16 %v373, %v370
      %v440 = vpack.c.b16 %v374, %v371
      %v441 = vpack.c.b16 %v378, %v375
      %v442 = vpack.c.b16 %v379, %v376
      %v443 = vpack.c.b16 %v380, %v377
      %v444 = vpack.c.b16 %v384, %v381
      %v445 = vpack.c.b16 %v385, %v382
      %v446 = vpack.c.b16 %v386, %v383
      %v447 = vpack.c.b16 %v390, %v387
      %v448 = vpack.c.b16 %v391, %v388
      %v449 = vpack.c.b16 %v392, %v389
      %v450 = vpack.c.b16 %v396, %v393
      %v451 = vpack.c.b16 %v397, %v394
      %v452 = vpack.c.b16 %v398, %v395
      %v453 = vpack.c.b16 %v402, %v399
      %v454 = vpack.c.b16 %v403, %v400
      %v455 = vpack.c.b16 %v404, %v401
      %v456 = vpack.c.b16 %v408, %v405
      %v457 = vpack.c.b16 %v409, %v406
      %v458 = vpack.c.b16 %v410, %v407
      %v527 = vunpack.c.l.b16 %v215
      %v528 = vunpack.c.l.b16 %v216
      %v529 = vunpack.c.l.b16 %v217
      %v530 = vunpack.c.l.b16 %v218
      %v531 = vunpack.c.l.b16 %v219
      %v532 = vunpack.c.l.b16 %v220
      %v533 = vunpack.c.l.b16 %v221
      %v534 = vunpack.c.l.b16 %v222
      %v535 = vunpack.c.l.b16 %v223
      %v536 = vunpack.c.l.b16 %v224
      %v537 = vunpack.c.l.b16 %v225
      %v538 = vunpack.c.l.b16 %v226
      %v539 = vunpack.c.l.b16 %v227
      %v540 = vunpack.c.l.b16 %v228
      %v541 = vunpack.c.l.b16 %v229
      %v542 = vunpack.c.l.b16 %v230
      %v543 = vunpack.c.l.b16 %v231
      %v544 = vunpack.c.l.b16 %v232
      %v545 = vunpack.c.l.b16 %v233
      %v546 = vunpack.c.l.b16 %v234
      %v547 = vunpack.c.l.b16 %v235
      %v548 = vunpack.c.l.b16 %v236
      %v549 = vunpack.c.l.b16 %v237
      %v550 = vunpack.c.l.b16 %v238
      %v551 = vunpack.c.l.b16 %v239
      %v552 = vunpack.c.l.b16 %v240
      %v553 = vunpack.c.l.b16 %v241
      %v554 = vunpack.c.l.b16 %v242
      %v555 = vunpack.c.l.b16 %v243
      %v556 = vunpack.c.l.b16 %v244
      %v557 = vunpack.c.l.b16 %v245
      %v558 = vunpack.c.l.b16 %v246
      %v559 = vunpack.c.l.b16 %v247
      %v560 = vunpack.c.l.b16 %v248
      %v561 = vunpack.c.l.b16 %v249
      %v562 = vunpack.c.l.b16 %v250
      %v563 = vpack.c.b16 %v528, %v527
      %v564 = vpack.c.b16 %v530, %v529
      %v565 = vpack.c.b16 %v532, %v531
      %v566 = vpack.c.b16 %v534, %v533
      %v567 = vpack.c.b16 %v536, %v535
      %v568 = vpack.c.b16 %v538, %v537
      %v569 = vpack.c.b16 %v540, %v539
      %v570 = vpack.c.b16 %v542, %v541
      %v571 = vpack.c.b16 %v544, %v543
      %v572 = vpack.c.b16 %v546, %v545
      %v573 = vpack.c.b16 %v548, %v547
      %v574 = vpack.c.b16 %v550, %v549
      %v575 = vpack.c.b16 %v552, %v551
      %v576 = vpack.c.b16 %v554, %v553
      %v577 = vpack.c.b16 %v556, %v555
      %v578 = vpack.c.b16 %v558, %v557
      %v579 = vpack.c.b16 %v560, %v559
      %v580 = vpack.c.b16 %v562, %v561
      %vm599 = vcmask 261120
      %v601 = vsel %vm599, %v413, 0
      %v604 = vsel %vm599, %v416, 0
      %v607 = vsel %vm599, %v419, 0
      %v610 = vsel %vm599, %v422, 0
      %v613 = vsel %vm599, %v425, 0
      %v616 = vsel %vm599, %v428, 0
      %v619 = vsel %vm599, %v431, 0
      %v622 = vsel %vm599, %v434, 0
      %v625 = vsel %vm599, %v437, 0
      %v628 = vsel %vm599, %v440, 0
      %v631 = vsel %vm599, %v443, 0
      %v634 = vsel %vm599, %v446, 0
      %v637 = vsel %vm599, %v449, 0
      %v640 = vsel %vm599, %v452, 0
      %v643 = vsel %vm599, %v455, 0
      %v646 = vsel %vm599, %v458, 0
      %648 = vmatpush.bf16.msra.mxu0 %v570
      %649 = vmatpush.bf16.msra.mxu0 %v569
      %650 = vmatpush.bf16.msra.mxu0 %v568
      %651 = vmatpush.bf16.msra.mxu0 %v567
      %652 = vmatpush.bf16.msra.mxu0 %v566
      %653 = vmatpush.bf16.msra.mxu0 %v565
      %654 = vmatpush.bf16.msra.mxu0 %v564
      %655 = vmatpush.bf16.msra.mxu0 %v563
      %656 = vmatmul.bf16.gmra.mxu0 %v411
      %v657 = vpop.f32.mrf.mxu0
      %v658 = vadd.f32 0.0, %v657
      %v659 = vpop.f32.mrf.mxu0
      %v660 = vadd.f32 0.0, %v659
      %661 = vmatmul.bf16.gmra.mxu0 %v414
      %v662 = vpop.f32.mrf.mxu0
      %v663 = vadd.f32 0.0, %v662
      %v664 = vpop.f32.mrf.mxu0
      %v665 = vadd.f32 0.0, %v664
      %666 = vmatmul.bf16.gmra.mxu0 %v417
      %v667 = vpop.f32.mrf.mxu0
      %v668 = vadd.f32 0.0, %v667
      %v669 = vpop.f32.mrf.mxu0
      %v670 = vadd.f32 0.0, %v669
      %671 = vmatmul.bf16.gmra.mxu0 %v420
      %v672 = vpop.f32.mrf.mxu0
      %v673 = vadd.f32 0.0, %v672
      %v674 = vpop.f32.mrf.mxu0
      %v675 = vadd.f32 0.0, %v674
      %676 = vmatmul.bf16.gmra.mxu0 %v423
      %v677 = vpop.f32.mrf.mxu0
      %v678 = vadd.f32 0.0, %v677
      %v679 = vpop.f32.mrf.mxu0
      %v680 = vadd.f32 0.0, %v679
      %681 = vmatmul.bf16.gmra.mxu0 %v426
      %v682 = vpop.f32.mrf.mxu0
      %v683 = vadd.f32 0.0, %v682
      %v684 = vpop.f32.mrf.mxu0
      %v685 = vadd.f32 0.0, %v684
      %686 = vmatmul.bf16.gmra.mxu0 %v429
      %v687 = vpop.f32.mrf.mxu0
      %v688 = vadd.f32 0.0, %v687
      %v689 = vpop.f32.mrf.mxu0
      %v690 = vadd.f32 0.0, %v689
      %691 = vmatmul.bf16.gmra.mxu0 %v432
      %v692 = vpop.f32.mrf.mxu0
      %v693 = vadd.f32 0.0, %v692
      %v694 = vpop.f32.mrf.mxu0
      %v695 = vadd.f32 0.0, %v694
      %696 = vmatmul.bf16.gmra.mxu0 %v435
      %v697 = vpop.f32.mrf.mxu0
      %v698 = vadd.f32 0.0, %v697
      %v699 = vpop.f32.mrf.mxu0
      %v700 = vadd.f32 0.0, %v699
      %701 = vmatmul.bf16.gmra.mxu0 %v438
      %v702 = vpop.f32.mrf.mxu0
      %v703 = vadd.f32 0.0, %v702
      %v704 = vpop.f32.mrf.mxu0
      %v705 = vadd.f32 0.0, %v704
      %706 = vmatmul.bf16.gmra.mxu0 %v441
      %v707 = vpop.f32.mrf.mxu0
      %v708 = vadd.f32 0.0, %v707
      %v709 = vpop.f32.mrf.mxu0
      %v710 = vadd.f32 0.0, %v709
      %711 = vmatmul.bf16.gmra.mxu0 %v444
      %v712 = vpop.f32.mrf.mxu0
      %v713 = vadd.f32 0.0, %v712
      %v714 = vpop.f32.mrf.mxu0
      %v715 = vadd.f32 0.0, %v714
      %716 = vmatmul.bf16.gmra.mxu0 %v447
      %v717 = vpop.f32.mrf.mxu0
      %v718 = vadd.f32 0.0, %v717
      %v719 = vpop.f32.mrf.mxu0
      %v720 = vadd.f32 0.0, %v719
      %721 = vmatmul.bf16.gmra.mxu0 %v450
      %v722 = vpop.f32.mrf.mxu0
      %v723 = vadd.f32 0.0, %v722
      %v724 = vpop.f32.mrf.mxu0
      %v725 = vadd.f32 0.0, %v724
      %726 = vmatmul.bf16.gmra.mxu0 %v453
      %v727 = vpop.f32.mrf.mxu0
      %v728 = vadd.f32 0.0, %v727
      %v729 = vpop.f32.mrf.mxu0
      %v730 = vadd.f32 0.0, %v729
      %731 = vmatmul.bf16.gmra.mxu0 %v456
      %v732 = vpop.f32.mrf.mxu0
      %v733 = vadd.f32 0.0, %v732
      %v734 = vpop.f32.mrf.mxu0
      %v735 = vadd.f32 0.0, %v734
      %736 = vdwg.mxu0
      %737 = vmatpush.bf16.msra.mxu0 %v578
      %738 = vmatpush.bf16.msra.mxu0 %v577
      %739 = vmatpush.bf16.msra.mxu0 %v576
      %740 = vmatpush.bf16.msra.mxu0 %v575
      %741 = vmatpush.bf16.msra.mxu0 %v574
      %742 = vmatpush.bf16.msra.mxu0 %v573
      %743 = vmatpush.bf16.msra.mxu0 %v572
      %744 = vmatpush.bf16.msra.mxu0 %v571
      %745 = vmatmul.bf16.gmra.mxu0 %v412
      %v746 = vpop.f32.mrf.mxu0
      %v747 = vadd.f32 %v658, %v746
      %v748 = vpop.f32.mrf.mxu0
      %v749 = vadd.f32 %v660, %v748
      %750 = vmatmul.bf16.gmra.mxu0 %v415
      %v751 = vpop.f32.mrf.mxu0
      %v752 = vadd.f32 %v663, %v751
      %v753 = vpop.f32.mrf.mxu0
      %v754 = vadd.f32 %v665, %v753
      %755 = vmatmul.bf16.gmra.mxu0 %v418
      %v756 = vpop.f32.mrf.mxu0
      %v757 = vadd.f32 %v668, %v756
      %v758 = vpop.f32.mrf.mxu0
      %v759 = vadd.f32 %v670, %v758
      %760 = vmatmul.bf16.gmra.mxu0 %v421
      %v761 = vpop.f32.mrf.mxu0
      %v762 = vadd.f32 %v673, %v761
      %v763 = vpop.f32.mrf.mxu0
      %v764 = vadd.f32 %v675, %v763
      %765 = vmatmul.bf16.gmra.mxu0 %v424
      %v766 = vpop.f32.mrf.mxu0
      %v767 = vadd.f32 %v678, %v766
      %v768 = vpop.f32.mrf.mxu0
      %v769 = vadd.f32 %v680, %v768
      %770 = vmatmul.bf16.gmra.mxu0 %v427
      %v771 = vpop.f32.mrf.mxu0
      %v772 = vadd.f32 %v683, %v771
      %v773 = vpop.f32.mrf.mxu0
      %v774 = vadd.f32 %v685, %v773
      %775 = vmatmul.bf16.gmra.mxu0 %v430
      %v776 = vpop.f32.mrf.mxu0
      %v777 = vadd.f32 %v688, %v776
      %v778 = vpop.f32.mrf.mxu0
      %v779 = vadd.f32 %v690, %v778
      %780 = vmatmul.bf16.gmra.mxu0 %v433
      %v781 = vpop.f32.mrf.mxu0
      %v782 = vadd.f32 %v693, %v781
      %v783 = vpop.f32.mrf.mxu0
      %v784 = vadd.f32 %v695, %v783
      %785 = vmatmul.bf16.gmra.mxu0 %v436
      %v786 = vpop.f32.mrf.mxu0
      %v787 = vadd.f32 %v698, %v786
      %v788 = vpop.f32.mrf.mxu0
      %v789 = vadd.f32 %v700, %v788
      %790 = vmatmul.bf16.gmra.mxu0 %v439
      %v791 = vpop.f32.mrf.mxu0
      %v792 = vadd.f32 %v703, %v791
      %v793 = vpop.f32.mrf.mxu0
      %v794 = vadd.f32 %v705, %v793
      %795 = vmatmul.bf16.gmra.mxu0 %v442
      %v796 = vpop.f32.mrf.mxu0
      %v797 = vadd.f32 %v708, %v796
      %v798 = vpop.f32.mrf.mxu0
      %v799 = vadd.f32 %v710, %v798
      %800 = vmatmul.bf16.gmra.mxu0 %v445
      %v801 = vpop.f32.mrf.mxu0
      %v802 = vadd.f32 %v713, %v801
      %v803 = vpop.f32.mrf.mxu0
      %v804 = vadd.f32 %v715, %v803
      %805 = vmatmul.bf16.gmra.mxu0 %v448
      %v806 = vpop.f32.mrf.mxu0
      %v807 = vadd.f32 %v718, %v806
      %v808 = vpop.f32.mrf.mxu0
      %v809 = vadd.f32 %v720, %v808
      %810 = vmatmul.bf16.gmra.mxu0 %v451
      %v811 = vpop.f32.mrf.mxu0
      %v812 = vadd.f32 %v723, %v811
      %v813 = vpop.f32.mrf.mxu0
      %v814 = vadd.f32 %v725, %v813
      %815 = vmatmul.bf16.gmra.mxu0 %v454
      %v816 = vpop.f32.mrf.mxu0
      %v817 = vadd.f32 %v728, %v816
      %v818 = vpop.f32.mrf.mxu0
      %v819 = vadd.f32 %v730, %v818
      %820 = vmatmul.bf16.gmra.mxu0 %v457
      %v821 = vpop.f32.mrf.mxu0
      %v822 = vadd.f32 %v733, %v821
      %v823 = vpop.f32.mrf.mxu0
      %v824 = vadd.f32 %v735, %v823
      %825 = vdwg.mxu0
      %826 = vmatpush.bf16.msra.mxu0 0
      %827 = vmatpush.bf16.msra.mxu0 0
      %828 = vmatpush.bf16.msra.mxu0 0
      %829 = vmatpush.bf16.msra.mxu0 0
      %830 = vmatpush.bf16.msra.mxu0 0
      %831 = vmatpush.bf16.msra.mxu0 0
      %832 = vmatpush.bf16.msra.mxu0 %v580
      %833 = vmatpush.bf16.msra.mxu0 %v579
      %834 = vmatmul.bf16.gmra.mxu0 %v601
      %v835 = vpop.f32.mrf.mxu0
      %v836 = vadd.f32 %v747, %v835
      %v837 = vpop.f32.mrf.mxu0
      %v838 = vadd.f32 %v749, %v837
      %839 = vmatmul.bf16.gmra.mxu0 %v604
      %v840 = vpop.f32.mrf.mxu0
      %v841 = vadd.f32 %v752, %v840
      %v842 = vpop.f32.mrf.mxu0
      %v843 = vadd.f32 %v754, %v842
      %844 = vmatmul.bf16.gmra.mxu0 %v607
      %v845 = vpop.f32.mrf.mxu0
      %v846 = vadd.f32 %v757, %v845
      %v847 = vpop.f32.mrf.mxu0
      %v848 = vadd.f32 %v759, %v847
      %849 = vmatmul.bf16.gmra.mxu0 %v610
      %v850 = vpop.f32.mrf.mxu0
      %v851 = vadd.f32 %v762, %v850
      %v852 = vpop.f32.mrf.mxu0
      %v853 = vadd.f32 %v764, %v852
      %854 = vmatmul.bf16.gmra.mxu0 %v613
      %v855 = vpop.f32.mrf.mxu0
      %v856 = vadd.f32 %v767, %v855
      %v857 = vpop.f32.mrf.mxu0
      %v858 = vadd.f32 %v769, %v857
      %859 = vmatmul.bf16.gmra.mxu0 %v616
      %v860 = vpop.f32.mrf.mxu0
      %v861 = vadd.f32 %v772, %v860
      %v862 = vpop.f32.mrf.mxu0
      %v863 = vadd.f32 %v774, %v862
      %864 = vmatmul.bf16.gmra.mxu0 %v619
      %v865 = vpop.f32.mrf.mxu0
      %v866 = vadd.f32 %v777, %v865
      %v867 = vpop.f32.mrf.mxu0
      %v868 = vadd.f32 %v779, %v867
      %869 = vmatmul.bf16.gmra.mxu0 %v622
      %v870 = vpop.f32.mrf.mxu0
      %v871 = vadd.f32 %v782, %v870
      %v872 = vpop.f32.mrf.mxu0
      %v873 = vadd.f32 %v784, %v872
      %874 = vmatmul.bf16.gmra.mxu0 %v625
      %v875 = vpop.f32.mrf.mxu0
      %v876 = vadd.f32 %v787, %v875
      %v877 = vpop.f32.mrf.mxu0
      %v878 = vadd.f32 %v789, %v877
      %879 = vmatmul.bf16.gmra.mxu0 %v628
      %v880 = vpop.f32.mrf.mxu0
      %v881 = vadd.f32 %v792, %v880
      %v882 = vpop.f32.mrf.mxu0
      %v883 = vadd.f32 %v794, %v882
      %884 = vmatmul.bf16.gmra.mxu0 %v631
      %v885 = vpop.f32.mrf.mxu0
      %v886 = vadd.f32 %v797, %v885
      %v887 = vpop.f32.mrf.mxu0
      %v888 = vadd.f32 %v799, %v887
      %889 = vmatmul.bf16.gmra.mxu0 %v634
      %v890 = vpop.f32.mrf.mxu0
      %v891 = vadd.f32 %v802, %v890
      %v892 = vpop.f32.mrf.mxu0
      %v893 = vadd.f32 %v804, %v892
      %894 = vmatmul.bf16.gmra.mxu0 %v637
      %v895 = vpop.f32.mrf.mxu0
      %v896 = vadd.f32 %v807, %v895
      %v897 = vpop.f32.mrf.mxu0
      %v898 = vadd.f32 %v809, %v897
      %899 = vmatmul.bf16.gmra.mxu0 %v640
      %v900 = vpop.f32.mrf.mxu0
      %v901 = vadd.f32 %v812, %v900
      %v902 = vpop.f32.mrf.mxu0
      %v903 = vadd.f32 %v814, %v902
      %904 = vmatmul.bf16.gmra.mxu0 %v643
      %v905 = vpop.f32.mrf.mxu0
      %v906 = vadd.f32 %v817, %v905
      %v907 = vpop.f32.mrf.mxu0
      %v908 = vadd.f32 %v819, %v907
      %909 = vmatmul.bf16.gmra.mxu0 %v646
      %v910 = vpop.f32.mrf.mxu0
      %v911 = vadd.f32 %v822, %v910
      %v912 = vpop.f32.mrf.mxu0
      %v913 = vadd.f32 %v824, %v912
      %914 = vdwg.mxu0
      %vm915 = vcmp.ge.f32.partialorder %v836, 0.0
      %vm916 = vcmp.ge.f32.partialorder %v838, 0.0
      %vm917 = vcmp.ge.f32.partialorder %v841, 0.0
      %vm918 = vcmp.ge.f32.partialorder %v843, 0.0
      %vm919 = vcmp.ge.f32.partialorder %v846, 0.0
      %vm920 = vcmp.ge.f32.partialorder %v848, 0.0
      %vm921 = vcmp.ge.f32.partialorder %v851, 0.0
      %vm922 = vcmp.ge.f32.partialorder %v853, 0.0
      %vm923 = vcmp.ge.f32.partialorder %v856, 0.0
      %vm924 = vcmp.ge.f32.partialorder %v858, 0.0
      %vm925 = vcmp.ge.f32.partialorder %v861, 0.0
      %vm926 = vcmp.ge.f32.partialorder %v863, 0.0
      %vm927 = vcmp.ge.f32.partialorder %v866, 0.0
      %vm928 = vcmp.ge.f32.partialorder %v868, 0.0
      %vm929 = vcmp.ge.f32.partialorder %v871, 0.0
      %vm930 = vcmp.ge.f32.partialorder %v873, 0.0
      %vm931 = vcmp.ge.f32.partialorder %v876, 0.0
      %vm932 = vcmp.ge.f32.partialorder %v878, 0.0
      %vm933 = vcmp.ge.f32.partialorder %v881, 0.0
      %vm934 = vcmp.ge.f32.partialorder %v883, 0.0
      %vm935 = vcmp.ge.f32.partialorder %v886, 0.0
      %vm936 = vcmp.ge.f32.partialorder %v888, 0.0
      %vm937 = vcmp.ge.f32.partialorder %v891, 0.0
      %vm938 = vcmp.ge.f32.partialorder %v893, 0.0
      %vm939 = vcmp.ge.f32.partialorder %v896, 0.0
      %vm940 = vcmp.ge.f32.partialorder %v898, 0.0
      %vm941 = vcmp.ge.f32.partialorder %v901, 0.0
      %vm942 = vcmp.ge.f32.partialorder %v903, 0.0
      %vm943 = vcmp.ge.f32.partialorder %v906, 0.0
      %vm944 = vcmp.ge.f32.partialorder %v908, 0.0
      %vm945 = vcmp.ge.f32.partialorder %v911, 0.0
      %vm946 = vcmp.ge.f32.partialorder %v913, 0.0
      %v947 = vmul.f32 %v836, 0.2
      %v948 = vmul.f32 %v838, 0.2
      %v949 = vmul.f32 %v841, 0.2
      %v950 = vmul.f32 %v843, 0.2
      %v951 = vmul.f32 %v846, 0.2
      %v952 = vmul.f32 %v848, 0.2
      %v953 = vmul.f32 %v851, 0.2
      %v954 = vmul.f32 %v853, 0.2
      %v955 = vmul.f32 %v856, 0.2
      %v956 = vmul.f32 %v858, 0.2
      %v957 = vmul.f32 %v861, 0.2
      %v958 = vmul.f32 %v863, 0.2
      %v959 = vmul.f32 %v866, 0.2
      %v960 = vmul.f32 %v868, 0.2
      %v961 = vmul.f32 %v871, 0.2
      %v962 = vmul.f32 %v873, 0.2
      %v963 = vmul.f32 %v876, 0.2
      %v964 = vmul.f32 %v878, 0.2
      %v965 = vmul.f32 %v881, 0.2
      %v966 = vmul.f32 %v883, 0.2
      %v967 = vmul.f32 %v886, 0.2
      %v968 = vmul.f32 %v888, 0.2
      %v969 = vmul.f32 %v891, 0.2
      %v970 = vmul.f32 %v893, 0.2
      %v971 = vmul.f32 %v896, 0.2
      %v972 = vmul.f32 %v898, 0.2
      %v973 = vmul.f32 %v901, 0.2
      %v974 = vmul.f32 %v903, 0.2
      %v975 = vmul.f32 %v906, 0.2
      %v976 = vmul.f32 %v908, 0.2
      %v977 = vmul.f32 %v911, 0.2
      %v978 = vmul.f32 %v913, 0.2
      %v979 = vsel %vm915, %v836, %v947
      %v980 = vsel %vm916, %v838, %v948
      %v981 = vsel %vm917, %v841, %v949
      %v982 = vsel %vm918, %v843, %v950
      %v983 = vsel %vm919, %v846, %v951
      %v984 = vsel %vm920, %v848, %v952
      %v985 = vsel %vm921, %v851, %v953
      %v986 = vsel %vm922, %v853, %v954
      %v987 = vsel %vm923, %v856, %v955
      %v988 = vsel %vm924, %v858, %v956
      %v989 = vsel %vm925, %v861, %v957
      %v990 = vsel %vm926, %v863, %v958
      %v991 = vsel %vm927, %v866, %v959
      %v992 = vsel %vm928, %v868, %v960
      %v993 = vsel %vm929, %v871, %v961
      %v994 = vsel %vm930, %v873, %v962
      %v995 = vsel %vm931, %v876, %v963
      %v996 = vsel %vm932, %v878, %v964
      %v997 = vsel %vm933, %v881, %v965
      %v998 = vsel %vm934, %v883, %v966
      %v999 = vsel %vm935, %v886, %v967
      %v1000 = vsel %vm936, %v888, %v968
      %v1001 = vsel %vm937, %v891, %v969
      %v1002 = vsel %vm938, %v893, %v970
      %v1003 = vsel %vm939, %v896, %v971
      %v1004 = vsel %vm940, %v898, %v972
      %v1005 = vsel %vm941, %v901, %v973
      %v1006 = vsel %vm942, %v903, %v974
      %v1007 = vsel %vm943, %v906, %v975
      %v1008 = vsel %vm944, %v908, %v976
      %v1009 = vsel %vm945, %v911, %v977
      %v1010 = vsel %vm946, %v913, %v978
      %1011 = vst [vmem:[%s148] sm:$0xff] %v979
      %1012 = vst [vmem:[%s148 + $0x8] sm:$0xff] %v980
      %1013 = vst [vmem:[%s148 + $0x10] sm:$0xff] %v981
      %1014 = vst [vmem:[%s148 + $0x18] sm:$0xff] %v982
      %1015 = vst [vmem:[%s148 + $0x20] sm:$0xff] %v983
      %1016 = vst [vmem:[%s148 + $0x28] sm:$0xff] %v984
      %1017 = vst [vmem:[%s148 + $0x30] sm:$0xff] %v985
      %1018 = vst [vmem:[%s148 + $0x38] sm:$0xff] %v986
      %1019 = vst [vmem:[%s148 + $0x40] sm:$0xff] %v987
      %1020 = vst [vmem:[%s148 + $0x48] sm:$0xff] %v988
      %1021 = vst [vmem:[%s148 + $0x50] sm:$0xff] %v989
      %1022 = vst [vmem:[%s148 + $0x58] sm:$0xff] %v990
      %1023 = vst [vmem:[%s148 + $0x60] sm:$0xff] %v991
      %1024 = vst [vmem:[%s148 + $0x68] sm:$0xff] %v992
      %1025 = vst [vmem:[%s148 + $0x70] sm:$0xff] %v993
      %1026 = vst [vmem:[%s148 + $0x78] sm:$0xff] %v994
      %1027 = vst [vmem:[%s148 + $0x80] sm:$0xff] %v995
      %1028 = vst [vmem:[%s148 + $0x88] sm:$0xff] %v996
      %1029 = vst [vmem:[%s148 + $0x90] sm:$0xff] %v997
      %1030 = vst [vmem:[%s148 + $0x98] sm:$0xff] %v998
      %1031 = vst [vmem:[%s148 + $0xa0] sm:$0xff] %v999
      %1032 = vst [vmem:[%s148 + $0xa8] sm:$0xff] %v1000
      %1033 = vst [vmem:[%s148 + $0xb0] sm:$0xff] %v1001
      %1034 = vst [vmem:[%s148 + $0xb8] sm:$0xff] %v1002
      %1035 = vst [vmem:[%s148 + $0xc0] sm:$0xff] %v1003
      %1036 = vst [vmem:[%s148 + $0xc8] sm:$0xff] %v1004
      %1037 = vst [vmem:[%s148 + $0xd0] sm:$0xff] %v1005
      %1038 = vst [vmem:[%s148 + $0xd8] sm:$0xff] %v1006
      %1039 = vst [vmem:[%s148 + $0xe0] sm:$0xff] %v1007
      %1040 = vst [vmem:[%s148 + $0xe8] sm:$0xff] %v1008
      %1041 = vst [vmem:[%s148 + $0xf0] sm:$0xff] %v1009
      %1042 = vst [vmem:[%s148 + $0xf8] sm:$0xff] %v1010
      %s1043 = smul.u32 32, %s13
      %p1044 = scmp.lt.s32.totalorder %s1043, 63
      %s1045 = scalar_select %p1044, %s1043, 63
      %s1046 = smul.addr %s1045, 8
      %s1047 = scalar_lea.vmem %s2, %s1046
      // Predicated region
      $region29: #{upsample_block_pallas.1} parent=27 // pred_check
        %p1048 = pneg %p78
      $region30: #{upsample_block_pallas.1} parent=27 // pred_check_branch
        %1050 = sbr.rel (%p1048) target = $region32
      $region31: #{upsample_block_pallas.1} parent=27 // pred_region
        %s1051 = smul.u32 32, %s13
      $region32: #{upsample_block_pallas.1} parent=27 // pred_fallthru
        _
    $region28: #{upsample_block_pallas.1} parent=5 // pred_fallthru
      _
    %p1052 = scmp.le.s32.totalorder 2, %s8
    // Predicated region
    $region33: #{upsample_block_pallas.1} parent=5 // pred_check
      %p1053 = pneg %p1052
    $region34: #{upsample_block_pallas.1} parent=5 // pred_check_branch
      %1055 = sbr.rel (%p1053) target = $region36
    $region35: #{upsample_block_pallas.1} parent=5 // pred_region
      %s1056 = ssub.s32 %s8, 2
      // Predicated region
      $region37: #{upsample_block_pallas.1} parent=35 // pred_check
        %p1057 = pneg %p84
      $region38: #{upsample_block_pallas.1} parent=35 // pred_check_branch
        %1059 = sbr.rel (%p1057) target = $region40
      $region39: #{upsample_block_pallas.1} parent=35 // pred_region
        %s1060 = smul.u32 32, %s14
        %p1061 = scmp.lt.s32.totalorder %s1060, 63
        %s1062 = scalar_select %p1061, %s1060, 63
        %s1063 = smul.addr %s1062, 8
        %s1064 = scalar_lea.vmem %s2, %s1063
      $region40: #{upsample_block_pallas.1} parent=35 // pred_fallthru
        _
    $region36: #{upsample_block_pallas.1} parent=5 // pred_fallthru
      _
  $region6: #{upsample_block_pallas.1} parent=0 // loop_footer
    %s12 = sadd.s32 1, %s8
  $region7: #{upsample_block_pallas.1} parent=0 // loop_footer_branch
    %7 = sbr.rel target = $region3
  $region8: #{upsample_block_pallas.1} parent=0 // loop_exit
    _

</llo_original>
